<compile_context>
chip_gen: v7x
topology: tpu7x:2x2x1
jax: 0.10.0
libtpu: 0.0.40
codegen_flags: <defaults>
</compile_context>

<pallas_src>
import jax
import jax.numpy as jnp
from jax.experimental import pallas as pl
from jax.experimental.pallas import tpu as pltpu

INPUT_DIM = 10
HIDDEN_DIM = 128
OUTPUT_DIM = 7


def mlp_kernel(x_ref, w1_ref, b1_ref, w2_ref, b2_ref, w3_ref, b3_ref, o_ref):
    # Layer 1: K=10 matmul is a negligible fraction of MXU work -> keep f32.
    h1 = jnp.dot(x_ref[...], w1_ref[...], preferred_element_type=jnp.float32)
    h1 = jnp.maximum(h1 + b1_ref[...], 0.0)
    # Layer 2: the only 128x128 matmul -> bf16 MXU operands, f32 accumulation.
    h2 = jnp.dot(h1.astype(jnp.bfloat16), w2_ref[...],
                 preferred_element_type=jnp.float32)
    h2 = jnp.maximum(h2 + b2_ref[...], 0.0)
    # Layer 3: N=7, tiny -> keep f32.
    out = jnp.dot(h2, w3_ref[...], preferred_element_type=jnp.float32) + b3_ref[...]
    o_ref[...] = out.astype(o_ref.dtype)


def _round_up(n, m):
    return ((n + m - 1) // m) * m


def mlp_policy_forward(x, params, *, tile_b=1024):
    """x: [B, INPUT_DIM] float32. params: dict of transposed weights/biases."""
    B, D = x.shape
    assert D == INPUT_DIM

    # Batch tile selection (no input padding):
    #  * cap at tile_b (multiple of 8),
    #  * on large batches ensure >= 2 grid steps so the parallel batch axis can
    #    shard across v7x's two TensorCores,
    #  * if the whole batch fits in one tile, use a single full-extent block
    #    (legal for any B, no raggedness); otherwise use a ragged grid where
    #    the final block's out-of-bounds writes are masked by Pallas.
    cap = _round_up(tile_b, 8)
    if B >= 2 * 256:
        cap = min(cap, _round_up((B + 1) // 2, 8))
    if B <= cap:
        tb = B
        grid = (1,)
    else:
        tb = cap
        grid = ((B + tb - 1) // tb,)

    # Only the 128x128 weight goes to bf16; everything else stays f32.
    w1 = params["w1"].astype(jnp.float32)
    b1 = params["b1"].astype(jnp.float32)
    w2 = params["w2"].astype(jnp.bfloat16)
    b2 = params["b2"].astype(jnp.float32)
    w3 = params["w3"].astype(jnp.float32)
    b3 = params["b3"].astype(jnp.float32)

    # Weights/biases replicated to every batch tile (constant block index ->
    # they remain resident in VMEM, no per-step re-DMA).
    def rep2d(shape):
        return pl.BlockSpec(shape, lambda i: (0, 0))

    out = pl.pallas_call(
        mlp_kernel,
        out_shape=jax.ShapeDtypeStruct((B, OUTPUT_DIM), jnp.float32),
        grid_spec=pltpu.PrefetchScalarGridSpec(
            num_scalar_prefetch=0,
            grid=grid,
            in_specs=[
                pl.BlockSpec((tb, INPUT_DIM), lambda i: (i, 0)),  # x tile
                rep2d(w1.shape), rep2d(b1.shape),
                rep2d(w2.shape), rep2d(b2.shape),
                rep2d(w3.shape), rep2d(b3.shape),
            ],
            out_specs=pl.BlockSpec((tb, OUTPUT_DIM), lambda i: (i, 0)),
        ),
        compiler_params=pltpu.CompilerParams(
            dimension_semantics=("parallel",),
        ),
    )(x, w1, b1, w2, b2, w3, b3)

    return out


def init_params(key):
    """Deterministic init mimicking PyTorch nn.Linear default (uniform ±1/sqrt(fan_in)).

    Weights are stored transposed: [in_features, out_features].
    """
    def linear(key, fan_in, fan_out):
        kw, kb = jax.random.split(key)
        bound = 1.0 / jnp.sqrt(float(fan_in))
        w = jax.random.uniform(kw, (fan_in, fan_out), jnp.float32, -bound, bound)
        b = jax.random.uniform(kb, (1, fan_out), jnp.float32, -bound, bound)
        return w, b

    k1, k2, k3 = jax.random.split(key, 3)
    w1, b1 = linear(k1, INPUT_DIM, HIDDEN_DIM)
    w2, b2 = linear(k2, HIDDEN_DIM, HIDDEN_DIM)
    w3, b3 = linear(k3, HIDDEN_DIM, OUTPUT_DIM)
    return {"w1": w1, "b1": b1, "w2": w2, "b2": b2, "w3": w3, "b3": b3}


def reference_forward(x, p):
    h1 = jnp.maximum(x @ p["w1"] + p["b1"], 0.0)
    h2 = jnp.maximum(h1 @ p["w2"] + p["b2"], 0.0)
    return h2 @ p["w3"] + p["b3"]


if __name__ == "__main__":
    key = jax.random.PRNGKey(0)
    kx, kx2, kp = jax.random.split(key, 3)

    params = init_params(kp)

    # Small batch: single full-extent block, no padding anywhere.
    batch = 16
    x = jax.random.normal(kx, (batch, INPUT_DIM), jnp.float32)
    out = mlp_policy_forward(x, params)
    out = jax.block_until_ready(out)
    ref = reference_forward(x, params)
    assert out.shape == (batch, OUTPUT_DIM)
    # Only the 128x128 layer uses bf16 operands (f32 accumulation).
    assert jnp.allclose(out, ref, atol=2e-2, rtol=2e-2)

    # Non-multiple-of-8 batch: still a single full-extent block at this size.
    batch2 = 300
    x2 = jax.random.normal(kx2, (batch2, INPUT_DIM), jnp.float32)
    out2 = mlp_policy_forward(x2, params)
    out2 = jax.block_until_ready(out2)
    ref2 = reference_forward(x2, params)
    assert out2.shape == (batch2, OUTPUT_DIM)
    assert jnp.allclose(out2, ref2, atol=2e-2, rtol=2e-2)

    # Larger batch: exercises the capped tile, the multi-step parallel grid
    # (>=2 steps for v7x megacore) and the ragged final block.
    batch3 = 1300
    x3 = jax.random.normal(kx, (batch3, INPUT_DIM), jnp.float32)
    out3 = mlp_policy_forward(x3, params)
    out3 = jax.block_until_ready(out3)
    ref3 = reference_forward(x3, params)
    assert out3.shape == (batch3, OUTPUT_DIM)
    assert jnp.allclose(out3, ref3, atol=2e-2, rtol=2e-2)

    print("KERNEL_OK")
</pallas_src>

<mosaic_0001>
module attributes {stable_mosaic.version = 11 : i64} {
  func.func @mlp_kernel(%arg0: i32, %arg1: memref<16x10xf32, #tpu.memory_space<vmem>>, %arg2: memref<10x128xf32, #tpu.memory_space<vmem>>, %arg3: memref<1x128xf32, #tpu.memory_space<vmem>>, %arg4: memref<128x128xbf16, #tpu.memory_space<vmem>>, %arg5: memref<1x128xf32, #tpu.memory_space<vmem>>, %arg6: memref<128x7xf32, #tpu.memory_space<vmem>>, %arg7: memref<1x7xf32, #tpu.memory_space<vmem>>, %arg8: memref<16x7xf32, #tpu.memory_space<vmem>>) attributes {dimension_semantics = [#tpu.dimension_semantics<parallel>], iteration_bounds = array<i64: 1>, scalar_prefetch = 0 : i64, scratch_operands = 0 : i64, tpu.core_type = #tpu.core_type<tc>, window_params = [{transform_indices = @transform_0, window_bounds = array<i64: 16, 10>}, {pipeline_mode = #tpu.pipeline_mode<synchronous>, transform_indices = @transform_1, window_bounds = array<i64: 10, 128>}, {pipeline_mode = #tpu.pipeline_mode<synchronous>, transform_indices = @transform_2, window_bounds = array<i64: 1, 128>}, {pipeline_mode = #tpu.pipeline_mode<synchronous>, transform_indices = @transform_3, window_bounds = array<i64: 128, 128>}, {pipeline_mode = #tpu.pipeline_mode<synchronous>, transform_indices = @transform_4, window_bounds = array<i64: 1, 128>}, {pipeline_mode = #tpu.pipeline_mode<synchronous>, transform_indices = @transform_5, window_bounds = array<i64: 128, 7>}, {pipeline_mode = #tpu.pipeline_mode<synchronous>, transform_indices = @transform_6, window_bounds = array<i64: 1, 7>}, {transform_indices = @transform_7, window_bounds = array<i64: 16, 7>}]} {
    %c0 = arith.constant 0 : index
    %c0_0 = arith.constant 0 : index
    %0 = vector.load %arg1[%c0, %c0_0] : memref<16x10xf32, #tpu.memory_space<vmem>>, vector<16x10xf32>
    %c0_1 = arith.constant 0 : index
    %c0_2 = arith.constant 0 : index
    %1 = vector.load %arg2[%c0_1, %c0_2] : memref<10x128xf32, #tpu.memory_space<vmem>>, vector<10x128xf32>
    %cst = arith.constant dense<0.000000e+00> : vector<16x128xf32>
    %2 = tpu.matmul %0, %1, %cst {dimension_numbers = #tpu.dot_dimension_numbers<[1], [0], [0], [1], [0, 0, 1, 1], [], []>} : vector<16x10xf32>, vector<10x128xf32>, vector<16x128xf32> -> vector<16x128xf32>
    %c0_3 = arith.constant 0 : index
    %c0_4 = arith.constant 0 : index
    %3 = vector.load %arg3[%c0_3, %c0_4] : memref<1x128xf32, #tpu.memory_space<vmem>>, vector<1x128xf32>
    %4 = vector.broadcast %3 : vector<1x128xf32> to vector<16x128xf32>
    %5 = arith.addf %2, %4 : vector<16x128xf32>
    %cst_5 = arith.constant 0.000000e+00 : f32
    %6 = vector.broadcast %cst_5 : f32 to vector<16x128xf32>
    %7 = arith.maximumf %5, %6 : vector<16x128xf32>
    %8 = arith.truncf %7 : vector<16x128xf32> to vector<16x128xbf16>
    %c0_6 = arith.constant 0 : index
    %c0_7 = arith.constant 0 : index
    %9 = vector.load %arg4[%c0_6, %c0_7] : memref<128x128xbf16, #tpu.memory_space<vmem>>, vector<128x128xbf16>
    %cst_8 = arith.constant dense<0.000000e+00> : vector<16x128xf32>
    %10 = tpu.matmul %8, %9, %cst_8 {dimension_numbers = #tpu.dot_dimension_numbers<[1], [0], [0], [1], [0, 0, 1, 1], [], []>} : vector<16x128xbf16>, vector<128x128xbf16>, vector<16x128xf32> -> vector<16x128xf32>
    %c0_9 = arith.constant 0 : index
    %c0_10 = arith.constant 0 : index
    %11 = vector.load %arg5[%c0_9, %c0_10] : memref<1x128xf32, #tpu.memory_space<vmem>>, vector<1x128xf32>
    %12 = vector.broadcast %11 : vector<1x128xf32> to vector<16x128xf32>
    %13 = arith.addf %10, %12 : vector<16x128xf32>
    %cst_11 = arith.constant 0.000000e+00 : f32
    %14 = vector.broadcast %cst_11 : f32 to vector<16x128xf32>
    %15 = arith.maximumf %13, %14 : vector<16x128xf32>
    %c0_12 = arith.constant 0 : index
    %c0_13 = arith.constant 0 : index
    %16 = vector.load %arg6[%c0_12, %c0_13] : memref<128x7xf32, #tpu.memory_space<vmem>>, vector<128x7xf32>
    %cst_14 = arith.constant dense<0.000000e+00> : vector<16x7xf32>
    %17 = tpu.matmul %15, %16, %cst_14 {dimension_numbers = #tpu.dot_dimension_numbers<[1], [0], [0], [1], [0, 0, 1, 1], [], []>} : vector<16x128xf32>, vector<128x7xf32>, vector<16x7xf32> -> vector<16x7xf32>
    %c0_15 = arith.constant 0 : index
    %c0_16 = arith.constant 0 : index
    %18 = vector.load %arg7[%c0_15, %c0_16] : memref<1x7xf32, #tpu.memory_space<vmem>>, vector<1x7xf32>
    %19 = vector.broadcast %18 : vector<1x7xf32> to vector<16x7xf32>
    %20 = arith.addf %17, %19 : vector<16x7xf32>
    %c0_17 = arith.constant 0 : index
    %c0_18 = arith.constant 0 : index
    %21 = vector.load %arg8[%c0_17, %c0_18] : memref<16x7xf32, #tpu.memory_space<vmem>>, vector<16x7xf32>
    tpu.vector_store %arg8[%c0_17, %c0_18], %20 {strides = array<i32>} : memref<16x7xf32, #tpu.memory_space<vmem>>, vector<16x7xf32>,
    return
  }
  func.func @transform_0(%arg0: i32) -> (i32, i32) {
    %c0_i32 = arith.constant 0 : i32
    %c0_i32_0 = arith.constant 0 : i32
    return %arg0, %c0_i32 : i32, i32
  }
  func.func @transform_1(%arg0: i32) -> (i32, i32) {
    %c0_i32 = arith.constant 0 : i32
    %c0_i32_0 = arith.constant 0 : i32
    %c0_i32_1 = arith.constant 0 : i32
    return %c0_i32, %c0_i32_0 : i32, i32
  }
  func.func @transform_2(%arg0: i32) -> (i32, i32) {
    %c0_i32 = arith.constant 0 : i32
    %c0_i32_0 = arith.constant 0 : i32
    %c0_i32_1 = arith.constant 0 : i32
    return %c0_i32, %c0_i32_0 : i32, i32
  }
  func.func @transform_3(%arg0: i32) -> (i32, i32) {
    %c0_i32 = arith.constant 0 : i32
    %c0_i32_0 = arith.constant 0 : i32
    %c0_i32_1 = arith.constant 0 : i32
    return %c0_i32, %c0_i32_0 : i32, i32
  }
  func.func @transform_4(%arg0: i32) -> (i32, i32) {
    %c0_i32 = arith.constant 0 : i32
    %c0_i32_0 = arith.constant 0 : i32
    %c0_i32_1 = arith.constant 0 : i32
    return %c0_i32, %c0_i32_0 : i32, i32
  }
  func.func @transform_5(%arg0: i32) -> (i32, i32) {
    %c0_i32 = arith.constant 0 : i32
    %c0_i32_0 = arith.constant 0 : i32
    %c0_i32_1 = arith.constant 0 : i32
    return %c0_i32, %c0_i32_0 : i32, i32
  }
  func.func @transform_6(%arg0: i32) -> (i32, i32) {
    %c0_i32 = arith.constant 0 : i32
    %c0_i32_0 = arith.constant 0 : i32
    %c0_i32_1 = arith.constant 0 : i32
    return %c0_i32, %c0_i32_0 : i32, i32
  }
  func.func @transform_7(%arg0: i32) -> (i32, i32) {
    %c0_i32 = arith.constant 0 : i32
    %c0_i32_0 = arith.constant 0 : i32
    return %arg0, %c0_i32 : i32, i32
  }
}

</mosaic_0001>

<llo_original>
// kernel: tpu_custom_call.1
$region0: #{tpu_custom_call.1}
  #allocation0 [shape = 'u32[]', space=smem, size = 0x4, offset = 0x4, fixed_abs, tag = 'smem constant byte address 0x4 - core index']
  #allocation1 [shape = 'u32[144,128]{1,0:T(1,128)}', space=vmem, size = 0x12000, scoped, tag = 'internal scratch']
  %s0 = inlined_call_operand.vmem [shape: f32[16,10], index: 0, kind: input, shape index: {}]
  %s1 = inlined_call_operand.vmem [shape: f32[10,128], index: 1, kind: input, shape index: {}]
  %s2 = inlined_call_operand.vmem [shape: f32[1,128], index: 2, kind: input, shape index: {}]
  %s3 = inlined_call_operand.vmem [shape: bf16[128,128], index: 3, kind: input, shape index: {}]
  %s4 = inlined_call_operand.vmem [shape: f32[1,128], index: 4, kind: input, shape index: {}]
  %s5 = inlined_call_operand.vmem [shape: f32[128,7], index: 5, kind: input, shape index: {}]
  %s6 = inlined_call_operand.vmem [shape: f32[1,7], index: 6, kind: input, shape index: {}]
  %s7 = inlined_call_operand.vmem [shape: f32[16,7], index: 7, kind: output, shape index: {}]
  %s8 = sld [smem:[#allocation0]]
  $region38: #{tpu_custom_call.1} parent=0
    _
  %s10 = ssub.s32 1, %s8
  %s11 = scalar_select 0, %s10, %s8
  // Predicated region
  $region2: #{tpu_custom_call.1} parent=0 // pred_check
    _
  $region3: #{tpu_custom_call.1} parent=0 // pred_check_branch
    %13 = sbr.rel (0) target = $region5
  $region4: #{tpu_custom_call.1} parent=0 // pred_region
    _
  $region5: #{tpu_custom_call.1} parent=0 // pred_fallthru
    _
  // Predicated region
  $region6: #{tpu_custom_call.1} parent=0 // pred_check
    _
  $region7: #{tpu_custom_call.1} parent=0 // pred_check_branch
    %15 = sbr.rel (0) target = $region9
  $region8: #{tpu_custom_call.1} parent=0 // pred_region
    _
  $region9: #{tpu_custom_call.1} parent=0 // pred_fallthru
    _
  // Predicated region
  $region10: #{tpu_custom_call.1} parent=0 // pred_check
    _
  $region11: #{tpu_custom_call.1} parent=0 // pred_check_branch
    %17 = sbr.rel (0) target = $region13
  $region12: #{tpu_custom_call.1} parent=0 // pred_region
    _
  $region13: #{tpu_custom_call.1} parent=0 // pred_fallthru
    _
  // Predicated region
  $region14: #{tpu_custom_call.1} parent=0 // pred_check
    _
  $region15: #{tpu_custom_call.1} parent=0 // pred_check_branch
    %19 = sbr.rel (0) target = $region17
  $region16: #{tpu_custom_call.1} parent=0 // pred_region
    _
  $region17: #{tpu_custom_call.1} parent=0 // pred_fallthru
    _
  // Predicated region
  $region18: #{tpu_custom_call.1} parent=0 // pred_check
    _
  $region19: #{tpu_custom_call.1} parent=0 // pred_check_branch
    %21 = sbr.rel (0) target = $region21
  $region20: #{tpu_custom_call.1} parent=0 // pred_region
    _
  $region21: #{tpu_custom_call.1} parent=0 // pred_fallthru
    _
  // Predicated region
  $region22: #{tpu_custom_call.1} parent=0 // pred_check
    _
  $region23: #{tpu_custom_call.1} parent=0 // pred_check_branch
    %23 = sbr.rel (0) target = $region25
  $region24: #{tpu_custom_call.1} parent=0 // pred_region
    _
  $region25: #{tpu_custom_call.1} parent=0 // pred_fallthru
    _
  // Predicated region
  $region26: #{tpu_custom_call.1} parent=0 // pred_check
    _
  $region27: #{tpu_custom_call.1} parent=0 // pred_check_branch
    %25 = sbr.rel (0) target = $region29
  $region28: #{tpu_custom_call.1} parent=0 // pred_region
    _
  $region29: #{tpu_custom_call.1} parent=0 // pred_fallthru
    _
  %v27 = vld [vmem:[%s0] sm:$0xff]
  %v28 = vld [vmem:[%s0 + $0x8] sm:$0xff]
  %v29 = vld [vmem:[%s1] sm:$0xff]
  %v30 = vld [vmem:[%s1 + $0x8] sm:$0x3]
  %v31 = vld [vmem:[%s2] sm:$0x1]
  %v33 = vlaneseq
  %v34 = vshrl.u32 %v33, 7
  %v35 = vsub.s32 0, %v34
  %v36 = vrot.slane %v31, %v35
  %vm38 = vcmask 80896
  %v40 = vsel %vm38, %v27, 0
  %v43 = vsel %vm38, %v28, 0
  %vm45 = vcmask 1041408
  %v47 = vsel %vm45, %v30, 0
  %49 = vmatprep.subr.mxu0 0.0
  %50 = vmatpush1.msra.mxu0 %v29
  %51 = vmatprep.subr.mxu0 0.0
  %52 = vmatpush1.msra.mxu0 %v47
  %53 = vmatprep.subr.mxu0 0.0
  %54 = vmatpush1.msra.mxu0 0.0
  %55 = vmatprep.subr.mxu0 0.0
  %56 = vmatpush1.msra.mxu0 0.0
  %57 = vmatprep.subr.mxu0 0.0
  %58 = vmatpush1.msra.mxu0 0.0
  %59 = vmatprep.subr.mxu0 0.0
  %60 = vmatpush1.msra.mxu0 0.0
  %61 = vmatprep.subr.mxu0 0.0
  %62 = vmatpush1.msra.mxu0 0.0
  %63 = vmatprep.subr.mxu0 0.0
  %64 = vmatpush1.msra.mxu0 0.0
  %65 = vmatprep.subr.mxu0 0.0
  %66 = vmatpush1.msra.mxu0 0.0
  %67 = vmatprep.subr.mxu0 0.0
  %68 = vmatpush1.msra.mxu0 0.0
  %69 = vmatprep.subr.mxu0 0.0
  %70 = vmatpush1.msra.mxu0 0.0
  %71 = vmatprep.subr.mxu0 0.0
  %72 = vmatpush1.msra.mxu0 0.0
  %73 = vmatprep.subr.mxu0 0.0
  %74 = vmatpush1.msra.mxu0 0.0
  %75 = vmatprep.subr.mxu0 0.0
  %76 = vmatpush1.msra.mxu0 0.0
  %77 = vmatprep.subr.mxu0 0.0
  %78 = vmatpush1.msra.mxu0 0.0
  %79 = vmatprep.subr.mxu0 0.0
  %80 = vmatpush1.msra.mxu0 0.0
  %81 = vmatprep.subr.mxu0 0.0
  %82 = vmatpush1.msra.mxu0 0.0
  %83 = vmatprep.subr.mxu0 0.0
  %84 = vmatpush1.msra.mxu0 0.0
  %85 = vmatprep.subr.mxu0 0.0
  %86 = vmatpush1.msra.mxu0 0.0
  %87 = vmatprep.subr.mxu0 0.0
  %88 = vmatpush1.msra.mxu0 0.0
  %89 = vmatprep.subr.mxu0 0.0
  %90 = vmatpush1.msra.mxu0 0.0
  %91 = vmatprep.subr.mxu0 0.0
  %92 = vmatpush1.msra.mxu0 0.0
  %93 = vmatprep.subr.mxu0 0.0
  %94 = vmatpush1.msra.mxu0 0.0
  %95 = vmatprep.subr.mxu0 0.0
  %96 = vmatpush1.msra.mxu0 0.0
  %97 = vmatprep.subr.mxu0 0.0
  %98 = vmatpush1.msra.mxu0 0.0
  %99 = vmatprep.subr.mxu0 0.0
  %100 = vmatpush1.msra.mxu0 0.0
  %101 = vmatprep.subr.mxu0 0.0
  %102 = vmatpush1.msra.mxu0 0.0
  %103 = vmatprep.subr.mxu0 0.0
  %104 = vmatpush1.msra.mxu0 0.0
  %105 = vmatprep.subr.mxu0 0.0
  %106 = vmatpush1.msra.mxu0 0.0
  %107 = vmatprep.subr.mxu0 0.0
  %108 = vmatpush1.msra.mxu0 0.0
  %109 = vmatprep.subr.mxu0 0.0
  %110 = vmatpush1.msra.mxu0 0.0
  %111 = vmatprep.subr.mxu0 0.0
  %112 = vmatpush1.msra.mxu0 0.0
  %113 = vmatprep.mubr.f32.mxu0 0.0
  %114 = vmatmul.mubr.f32.gmra.mrb[0].mxu0 %v40
  %v115 = vpop.f32.mrb[0].mxu0
  %v116 = vadd.f32 %v36, %v115
  %v117 = vpop.f32.mrb[0].mxu0
  %118 = vmatprep.mubr.f32.mxu0 0.0
  %119 = vmatmul.mubr.f32.gmra.mrb[0].mxu0 %v43
  %v120 = vpop.f32.mrb[0].mxu0
  %v121 = vadd.f32 %v36, %v120
  %v122 = vpop.f32.mrb[0].mxu0
  %123 = vdwg.mxu0
  %v124 = vmax.f32 %v116, 0.0
  %v125 = vmax.f32 %v121, 0.0
  %v126 = vpack.c.bf16 %v125, %v124
  %v127 = vld [vmem:[%s3] sm:$0xf]
  %v128 = vld [vmem:[%s3 + $0x4] sm:$0xf]
  %v129 = vld [vmem:[%s3 + $0x8] sm:$0xf]
  %v130 = vld [vmem:[%s3 + $0xc] sm:$0xf]
  %v131 = vld [vmem:[%s3 + $0x10] sm:$0xf]
  %v132 = vld [vmem:[%s3 + $0x14] sm:$0xf]
  %v133 = vld [vmem:[%s3 + $0x18] sm:$0xf]
  %v134 = vld [vmem:[%s3 + $0x1c] sm:$0xf]
  %v135 = vld [vmem:[%s3 + $0x20] sm:$0xf]
  %v136 = vld [vmem:[%s3 + $0x24] sm:$0xf]
  %v137 = vld [vmem:[%s3 + $0x28] sm:$0xf]
  %v138 = vld [vmem:[%s3 + $0x2c] sm:$0xf]
  %v139 = vld [vmem:[%s3 + $0x30] sm:$0xf]
  %v140 = vld [vmem:[%s3 + $0x34] sm:$0xf]
  %v141 = vld [vmem:[%s3 + $0x38] sm:$0xf]
  %v142 = vld [vmem:[%s3 + $0x3c] sm:$0xf]
  %v143 = vld [vmem:[%s4] sm:$0x1]
  %v145 = vlaneseq
  %v146 = vshrl.u32 %v145, 7
  %v147 = vsub.s32 0, %v146
  %v148 = vrot.slane %v143, %v147
  %v166 = vunpack.c.l.b16 %v127
  %v167 = vunpack.c.l.b16 %v128
  %v168 = vunpack.c.l.b16 %v129
  %v169 = vunpack.c.l.b16 %v130
  %v170 = vunpack.c.l.b16 %v131
  %v171 = vunpack.c.l.b16 %v132
  %v172 = vunpack.c.l.b16 %v133
  %v173 = vunpack.c.l.b16 %v134
  %v174 = vunpack.c.l.b16 %v135
  %v175 = vunpack.c.l.b16 %v136
  %v176 = vunpack.c.l.b16 %v137
  %v177 = vunpack.c.l.b16 %v138
  %v178 = vunpack.c.l.b16 %v139
  %v179 = vunpack.c.l.b16 %v140
  %v180 = vunpack.c.l.b16 %v141
  %v181 = vunpack.c.l.b16 %v142
  %v182 = vpack.c.b16 %v167, %v166
  %v183 = vpack.c.b16 %v169, %v168
  %v184 = vpack.c.b16 %v171, %v170
  %v185 = vpack.c.b16 %v173, %v172
  %v186 = vpack.c.b16 %v175, %v174
  %v187 = vpack.c.b16 %v177, %v176
  %v188 = vpack.c.b16 %v179, %v178
  %v189 = vpack.c.b16 %v181, %v180
  %198 = vmatprep.subr.bf16.mxu0 0
  %199 = vmatpush1.bf16.msra.mxu0 %v182
  %200 = vmatprep.subr.bf16.mxu0 0
  %201 = vmatpush1.bf16.msra.mxu0 %v183
  %202 = vmatprep.subr.bf16.mxu0 0
  %203 = vmatpush1.bf16.msra.mxu0 %v184
  %204 = vmatprep.subr.bf16.mxu0 0
  %205 = vmatpush1.bf16.msra.mxu0 %v185
  %206 = vmatprep.subr.bf16.mxu0 0
  %207 = vmatpush1.bf16.msra.mxu0 %v186
  %208 = vmatprep.subr.bf16.mxu0 0
  %209 = vmatpush1.bf16.msra.mxu0 %v187
  %210 = vmatprep.subr.bf16.mxu0 0
  %211 = vmatpush1.bf16.msra.mxu0 %v188
  %212 = vmatprep.subr.bf16.mxu0 0
  %213 = vmatpush1.bf16.msra.mxu0 %v189
  %214 = vmatprep.subr.bf16.mxu0 0
  %215 = vmatpush1.bf16.msra.mxu0 0
  %216 = vmatprep.subr.bf16.mxu0 0
  %217 = vmatpush1.bf16.msra.mxu0 0
  %218 = vmatprep.subr.bf16.mxu0 0
  %219 = vmatpush1.bf16.msra.mxu0 0
  %220 = vmatprep.subr.bf16.mxu0 0
  %221 = vmatpush1.bf16.msra.mxu0 0
  %222 = vmatprep.subr.bf16.mxu0 0
  %223 = vmatpush1.bf16.msra.mxu0 0
  %224 = vmatprep.subr.bf16.mxu0 0
  %225 = vmatpush1.bf16.msra.mxu0 0
  %226 = vmatprep.subr.bf16.mxu0 0
  %227 = vmatpush1.bf16.msra.mxu0 0
  %228 = vmatprep.subr.bf16.mxu0 0
  %229 = vmatpush1.bf16.msra.mxu0 0
  %230 = vmatprep.mubr.bf16.mxu0 0
  %231 = vmatmul.mubr.bf16.gmra.mrb[0].mxu0 %v126
  %v232 = vpop.f32.mrb[0].mxu0
  %v233 = vadd.f32 %v148, %v232
  %v234 = vpop.f32.mrb[0].mxu0
  %v235 = vpop.f32.mrb[0].mxu0
  %v236 = vadd.f32 %v148, %v235
  %v237 = vpop.f32.mrb[0].mxu0
  %238 = vdwg.mxu0
  %v239 = vmax.f32 %v233, 0.0
  %v240 = vmax.f32 %v236, 0.0
  %v241 = vld [vmem:[%s5] sm:$0xff]
  %v242 = vld [vmem:[%s5 + $0x8] sm:$0xff]
  %v243 = vld [vmem:[%s5 + $0x10] sm:$0xff]
  %v244 = vld [vmem:[%s5 + $0x18] sm:$0xff]
  %v245 = vld [vmem:[%s5 + $0x20] sm:$0xff]
  %v246 = vld [vmem:[%s5 + $0x28] sm:$0xff]
  %v247 = vld [vmem:[%s5 + $0x30] sm:$0xff]
  %v248 = vld [vmem:[%s5 + $0x38] sm:$0xff]
  %v249 = vld [vmem:[%s5 + $0x40] sm:$0xff]
  %v250 = vld [vmem:[%s5 + $0x48] sm:$0xff]
  %v251 = vld [vmem:[%s5 + $0x50] sm:$0xff]
  %v252 = vld [vmem:[%s5 + $0x58] sm:$0xff]
  %v253 = vld [vmem:[%s5 + $0x60] sm:$0xff]
  %v254 = vld [vmem:[%s5 + $0x68] sm:$0xff]
  %v255 = vld [vmem:[%s5 + $0x70] sm:$0xff]
  %v256 = vld [vmem:[%s5 + $0x78] sm:$0xff]
  %v257 = vld [vmem:[%s6] sm:$0x1]
  %v259 = vlaneseq
  %v260 = vshrl.u32 %v259, 7
  %v261 = vsub.s32 0, %v260
  %v262 = vrot.slane %v257, %v261
  %264 = vmatprep.subr.mxu0 0.0
  %265 = vmatpush1.msra.mxu0 %v241
  %266 = vmatprep.subr.mxu0 0.0
  %267 = vmatpush1.msra.mxu0 %v242
  %268 = vmatprep.subr.mxu0 0.0
  %269 = vmatpush1.msra.mxu0 %v243
  %270 = vmatprep.subr.mxu0 0.0
  %271 = vmatpush1.msra.mxu0 %v244
  %272 = vmatprep.subr.mxu0 0.0
  %273 = vmatpush1.msra.mxu0 %v245
  %274 = vmatprep.subr.mxu0 0.0
  %275 = vmatpush1.msra.mxu0 %v246
  %276 = vmatprep.subr.mxu0 0.0
  %277 = vmatpush1.msra.mxu0 %v247
  %278 = vmatprep.subr.mxu0 0.0
  %279 = vmatpush1.msra.mxu0 %v248
  %280 = vmatprep.subr.mxu0 0.0
  %281 = vmatpush1.msra.mxu0 %v249
  %282 = vmatprep.subr.mxu0 0.0
  %283 = vmatpush1.msra.mxu0 %v250
  %284 = vmatprep.subr.mxu0 0.0
  %285 = vmatpush1.msra.mxu0 %v251
  %286 = vmatprep.subr.mxu0 0.0
  %287 = vmatpush1.msra.mxu0 %v252
  %288 = vmatprep.subr.mxu0 0.0
  %289 = vmatpush1.msra.mxu0 %v253
  %290 = vmatprep.subr.mxu0 0.0
  %291 = vmatpush1.msra.mxu0 %v254
  %292 = vmatprep.subr.mxu0 0.0
  %293 = vmatpush1.msra.mxu0 %v255
  %294 = vmatprep.subr.mxu0 0.0
  %295 = vmatpush1.msra.mxu0 %v256
  %296 = vmatprep.subr.mxu0 0.0
  %297 = vmatpush1.msra.mxu0 0.0
  %298 = vmatprep.subr.mxu0 0.0
  %299 = vmatpush1.msra.mxu0 0.0
  %300 = vmatprep.subr.mxu0 0.0
  %301 = vmatpush1.msra.mxu0 0.0
  %302 = vmatprep.subr.mxu0 0.0
  %303 = vmatpush1.msra.mxu0 0.0
  %304 = vmatprep.subr.mxu0 0.0
  %305 = vmatpush1.msra.mxu0 0.0
  %306 = vmatprep.subr.mxu0 0.0
  %307 = vmatpush1.msra.mxu0 0.0
  %308 = vmatprep.subr.mxu0 0.0
  %309 = vmatpush1.msra.mxu0 0.0
  %310 = vmatprep.subr.mxu0 0.0
  %311 = vmatpush1.msra.mxu0 0.0
  %312 = vmatprep.subr.mxu0 0.0
  %313 = vmatpush1.msra.mxu0 0.0
  %314 = vmatprep.subr.mxu0 0.0
  %315 = vmatpush1.msra.mxu0 0.0
  %316 = vmatprep.subr.mxu0 0.0
  %317 = vmatpush1.msra.mxu0 0.0
  %318 = vmatprep.subr.mxu0 0.0
  %319 = vmatpush1.msra.mxu0 0.0
  %320 = vmatprep.subr.mxu0 0.0
  %321 = vmatpush1.msra.mxu0 0.0
  %322 = vmatprep.subr.mxu0 0.0
  %323 = vmatpush1.msra.mxu0 0.0
  %324 = vmatprep.subr.mxu0 0.0
  %325 = vmatpush1.msra.mxu0 0.0
  %326 = vmatprep.subr.mxu0 0.0
  %327 = vmatpush1.msra.mxu0 0.0
  %328 = vmatprep.mubr.f32.mxu0 0.0
  %329 = vmatmul.mubr.f32.gmra.mrb[0].mxu0 %v239
  %v330 = vpop.f32.mrb[0].mxu0
  %v331 = vadd.f32 %v262, %v330
  %v332 = vpop.f32.mrb[0].mxu0
  %333 = vmatprep.mubr.f32.mxu0 0.0
  %334 = vmatmul.mubr.f32.gmra.mrb[0].mxu0 %v240
  %v335 = vpop.f32.mrb[0].mxu0
  %v336 = vadd.f32 %v262, %v335
  %v337 = vpop.f32.mrb[0].mxu0
  %338 = vdwg.mxu0
  %vm339 = vcmask 56320
  %340 = vst.msk [vmem:[%s7] sm:$0xff] %vm339, %v331
  %341 = vst.msk [vmem:[%s7 + $0x8] sm:$0xff] %vm339, %v336
  // Predicated region
  $region30: #{tpu_custom_call.1} parent=0 // pred_check
    _
  $region31: #{tpu_custom_call.1} parent=0 // pred_check_branch
    %343 = sbr.rel (0) target = $region33
  $region32: #{tpu_custom_call.1} parent=0 // pred_region
    _
  $region33: #{tpu_custom_call.1} parent=0 // pred_fallthru
    _
  // Predicated region
  $region34: #{tpu_custom_call.1} parent=0 // pred_check
    _
  $region35: #{tpu_custom_call.1} parent=0 // pred_check_branch
    %345 = sbr.rel (0) target = $region37
  $region36: #{tpu_custom_call.1} parent=0 // pred_region
    _
  $region37: #{tpu_custom_call.1} parent=0 // pred_fallthru
    _

</llo_original>
